<compile_context>
chip_gen: v5e
topology: v5e:2x2
jax: 0.10.0
libtpu: 0.0.40
codegen_flags: <defaults>
</compile_context>

<pallas_src>
from functools import partial
import math

import jax
import jax.numpy as jnp
from jax.experimental import pallas as pl
from jax.experimental.pallas import tpu as pltpu


def _tile_kernel(x_ref, o_ref, *, n_channels):
    # x_ref: (1, bR, C) dense input tile; o_ref: (1, n, bR, C) output block.
    # Static unroll over the (small) repeat count; each store is a full-width,
    # sublane-dense (bR, C) copy.  Re-reading x_ref per stripe keeps the live
    # vreg set to one tile (Mosaic fuses vld->vst per vreg, no spills).
    for t in range(n_channels):
        o_ref[0, t] = x_ref[0]


def _sublane_pack(itemsize):
    # f32/i32 -> 8 rows per vreg tile, bf16/f16 -> 16, int8/fp8 -> 32.
    return max(8, 32 // max(1, itemsize))


def _choose_lane_width(L, sub_pack, max_lanes):
    """Largest multiple-of-128 divisor of L (<= max_lanes) that leaves enough
    rows (R = L // C >= sub_pack) for dense sublane blocking; falls back to the
    full run L when L is not 128-aligned or too small."""
    if L % 128 != 0 or L <= 128:
        # TODO(synk): pad unaligned L to a 128 multiple for huge ragged runs;
        # typical TileChannels inputs only reach this branch at tiny sizes.
        return L
    best_any = None
    k_max = max(1, min(L, max_lanes) // 128)
    for k in range(k_max, 0, -1):
        c = 128 * k
        if L % c:
            continue
        if best_any is None:
            best_any = c                     # largest lane-dense divisor
        if L // c >= sub_pack:
            return c                         # largest divisor with tall R
    return best_any if best_any is not None else L


def tile_channels(x, dim=0, n_channels=3, *, max_block_bytes=2 << 20,
                  min_pallas_bytes=0):
    """Pallas implementation of TileChannels(dim, n_channels).forward(x)."""
    dim = dim % x.ndim
    shape = x.shape
    n = int(n_channels)
    P = math.prod(shape[:dim]) if dim > 0 else 1
    D = shape[dim]
    Q = math.prod(shape[dim + 1:]) if dim < x.ndim - 1 else 1
    L = D * Q
    out_shape = shape[:dim] + (n * D,) + shape[dim + 1:]

    itemsize = jnp.dtype(x.dtype).itemsize
    if P * L * itemsize < min_pallas_bytes or L == 0 or P == 0:
        # Optional XLA fast-path for tiny/degenerate inputs (launch + per-step
        # pipeline overhead dominates there).  Off by default so the Pallas
        # kernel is always exercised.
        dims = [1] * x.ndim
        dims[dim] = n
        return jnp.tile(x, tuple(dims))

    sub_pack = _sublane_pack(itemsize)
    # Cap lane width so even a single sublane-group of rows fits the budget.
    max_lanes = max(128, (max_block_bytes // ((1 + n) * sub_pack * itemsize))
                    // 128 * 128)
    C = _choose_lane_width(L, sub_pack, max_lanes)
    R = L // C

    # Row block: largest sub_pack multiple whose (input + n-way output) block
    # fits the budget; whole R if it already fits (full-extent block is legal).
    per_row_bytes = (1 + n) * C * itemsize
    max_rows = max(sub_pack,
                   (max_block_bytes // per_row_bytes) // sub_pack * sub_pack)
    bR = R if R <= max_rows else max_rows
    num_r = pl.cdiv(R, bR)

    x3 = x.reshape(P, R, C)                  # contiguous view (free)

    if num_r >= P:                           # larger parallel axis outermost
        grid = (num_r, P)
        in_map = lambda r, p: (p, r, 0)
        out_map = lambda r, p: (p, 0, r, 0)
    else:
        grid = (P, num_r)
        in_map = lambda p, r: (p, r, 0)
        out_map = lambda p, r: (p, 0, r, 0)

    block_bytes = (1 + n) * bR * C * itemsize
    vmem_limit = int(min(64 << 20, max(32 << 20, 4 * block_bytes)))

    out4 = pl.pallas_call(
        partial(_tile_kernel, n_channels=n),
        out_shape=jax.ShapeDtypeStruct((P, n, R, C), x.dtype),
        grid=grid,
        in_specs=[pl.BlockSpec((1, bR, C), in_map)],
        out_specs=pl.BlockSpec((1, n, bR, C), out_map),
        compiler_params=pltpu.CompilerParams(
            dimension_semantics=("parallel", "parallel"),
            vmem_limit_bytes=vmem_limit),
        cost_estimate=pl.CostEstimate(
            flops=0, transcendentals=0,
            bytes_accessed=(1 + n) * P * L * itemsize),
    )(x3)

    # (P, n, R, C) row-major == (P, n, D, Q) row-major == prefix+(n*D,)+suffix.
    return out4.reshape(out_shape)


def _reference_tile_channels(x, dim, n_channels):
    dims = [1] * x.ndim
    dims[dim] = n_channels
    return jnp.tile(x, tuple(dims))


if __name__ == "__main__":
    key = jax.random.PRNGKey(0)
    k1, k2, k3, k4 = jax.random.split(key, 4)

    # 1) Batched NCHW, tile the channel axis (dim=1) to 3x channels.
    x = jax.random.normal(k1, (2, 4, 16, 16), dtype=jnp.float32)
    out = jax.block_until_ready(tile_channels(x, dim=1, n_channels=3))
    ref = _reference_tile_channels(x, 1, 3)
    assert out.shape == (2, 12, 16, 16) and out.dtype == x.dtype
    assert jnp.array_equal(out, ref), "mismatch vs jnp.tile (dim=1)"

    # 2) Module defaults (dim=0, n_channels=3) on a single-channel CHW image.
    img = jax.random.normal(k2, (1, 16, 16), dtype=jnp.float32)
    out2 = jax.block_until_ready(tile_channels(img, dim=0, n_channels=3))
    assert out2.shape == (3, 16, 16)
    assert jnp.array_equal(out2, _reference_tile_channels(img, 0, 3)), \
        "mismatch vs jnp.tile (dim=0)"

    # 3) dim == last axis (suffix Q == 1), bf16.
    y = jax.random.normal(k3, (2, 4, 8, 32), dtype=jnp.bfloat16)
    out3 = jax.block_until_ready(tile_channels(y, dim=-1, n_channels=3))
    assert out3.shape == (2, 4, 8, 96) and out3.dtype == y.dtype
    assert jnp.array_equal(out3, _reference_tile_channels(y, 3, 3)), \
        "mismatch vs jnp.tile (dim=-1)"

    # 4) Non-power-of-two channel count in the tiled axis (C=256, R=10 rows).
    z = jax.random.normal(k4, (2, 5, 16, 32), dtype=jnp.float32)
    ref4 = _reference_tile_channels(z, 1, 3)
    out4 = jax.block_until_ready(tile_channels(z, dim=1, n_channels=3))
    assert out4.shape == (2, 15, 16, 32)
    assert jnp.array_equal(out4, ref4), "mismatch vs jnp.tile (odd D)"

    # 5) Small block budget forces multi-row-block + ragged-edge path
    #    (C=128, R=20, bR=8 -> 3 row blocks, last one partial).
    out5 = jax.block_until_ready(
        tile_channels(z, dim=1, n_channels=3, max_block_bytes=16 * 1024))
    assert jnp.array_equal(out5, ref4), "mismatch vs jnp.tile (chunked/ragged)"

    print("KERNEL_OK")
</pallas_src>

<mosaic_0001>
module attributes {stable_mosaic.version = 11 : i64} {
  func.func @_tile_kernel(%arg0: i32, %arg1: i32, %arg2: memref<1x8x128xf32, #tpu.memory_space<vmem>>, %arg3: memref<1x3x8x128xf32, #tpu.memory_space<vmem>>) attributes {dimension_semantics = [#tpu.dimension_semantics<parallel>, #tpu.dimension_semantics<parallel>], iteration_bounds = array<i64: 2, 1>, scalar_prefetch = 0 : i64, scratch_operands = 0 : i64, tpu.core_type = #tpu.core_type<tc>, window_params = [{transform_indices = @transform_0, window_bounds = array<i64: 1, 8, 128>}, {transform_indices = @transform_1, window_bounds = array<i64: 1, 3, 8, 128>}]} {
    %c0 = arith.constant 0 : index
    %c0_0 = arith.constant 0 : index
    %c0_1 = arith.constant 0 : index
    %0 = vector.load %arg2[%c0, %c0_0, %c0_1] : memref<1x8x128xf32, #tpu.memory_space<vmem>>, vector<1x8x128xf32>
    %1 = vector.shape_cast %0 : vector<1x8x128xf32> to vector<8x128xf32>
    %c0_2 = arith.constant 0 : index
    %c0_3 = arith.constant 0 : index
    %c0_4 = arith.constant 0 : index
    %c0_5 = arith.constant 0 : index
    %2 = vector.load %arg3[%c0_2, %c0_3, %c0_4, %c0_5] : memref<1x3x8x128xf32, #tpu.memory_space<vmem>>, vector<1x1x8x128xf32>
    %3 = vector.shape_cast %2 : vector<1x1x8x128xf32> to vector<8x128xf32>
    %4 = vector.shape_cast %1 : vector<8x128xf32> to vector<1x1x8x128xf32>
    tpu.vector_store %arg3[%c0_2, %c0_3, %c0_4, %c0_5], %4 {strides = array<i32>} : memref<1x3x8x128xf32, #tpu.memory_space<vmem>>, vector<1x1x8x128xf32>,
    %c0_6 = arith.constant 0 : index
    %c0_7 = arith.constant 0 : index
    %c0_8 = arith.constant 0 : index
    %5 = vector.load %arg2[%c0_6, %c0_7, %c0_8] : memref<1x8x128xf32, #tpu.memory_space<vmem>>, vector<1x8x128xf32>
    %6 = vector.shape_cast %5 : vector<1x8x128xf32> to vector<8x128xf32>
    %c0_9 = arith.constant 0 : index
    %c1 = arith.constant 1 : index
    %c0_10 = arith.constant 0 : index
    %c0_11 = arith.constant 0 : index
    %7 = vector.load %arg3[%c0_9, %c1, %c0_10, %c0_11] : memref<1x3x8x128xf32, #tpu.memory_space<vmem>>, vector<1x1x8x128xf32>
    %8 = vector.shape_cast %7 : vector<1x1x8x128xf32> to vector<8x128xf32>
    %9 = vector.shape_cast %6 : vector<8x128xf32> to vector<1x1x8x128xf32>
    tpu.vector_store %arg3[%c0_9, %c1, %c0_10, %c0_11], %9 {strides = array<i32>} : memref<1x3x8x128xf32, #tpu.memory_space<vmem>>, vector<1x1x8x128xf32>,
    %c0_12 = arith.constant 0 : index
    %c0_13 = arith.constant 0 : index
    %c0_14 = arith.constant 0 : index
    %10 = vector.load %arg2[%c0_12, %c0_13, %c0_14] : memref<1x8x128xf32, #tpu.memory_space<vmem>>, vector<1x8x128xf32>
    %11 = vector.shape_cast %10 : vector<1x8x128xf32> to vector<8x128xf32>
    %c0_15 = arith.constant 0 : index
    %c2 = arith.constant 2 : index
    %c0_16 = arith.constant 0 : index
    %c0_17 = arith.constant 0 : index
    %12 = vector.load %arg3[%c0_15, %c2, %c0_16, %c0_17] : memref<1x3x8x128xf32, #tpu.memory_space<vmem>>, vector<1x1x8x128xf32>
    %13 = vector.shape_cast %12 : vector<1x1x8x128xf32> to vector<8x128xf32>
    %14 = vector.shape_cast %11 : vector<8x128xf32> to vector<1x1x8x128xf32>
    tpu.vector_store %arg3[%c0_15, %c2, %c0_16, %c0_17], %14 {strides = array<i32>} : memref<1x3x8x128xf32, #tpu.memory_space<vmem>>, vector<1x1x8x128xf32>,
    return
  }
  func.func @transform_0(%arg0: i32, %arg1: i32) -> (i32, i32, i32) {
    %c0_i32 = arith.constant 0 : i32
    %c0_i32_0 = arith.constant 0 : i32
    return %arg0, %arg1, %c0_i32 : i32, i32, i32
  }
  func.func @transform_1(%arg0: i32, %arg1: i32) -> (i32, i32, i32, i32) {
    %c0_i32 = arith.constant 0 : i32
    %c0_i32_0 = arith.constant 0 : i32
    %c0_i32_1 = arith.constant 0 : i32
    return %arg0, %c0_i32, %arg1, %c0_i32_0 : i32, i32, i32, i32
  }
}

</mosaic_0001>

<llo_original>
// kernel: tpu_custom_call.1
$region0: #{tpu_custom_call.1}
  #allocation0 [shape = 'u32[]', space=smem, size = 0x4, offset = 0x4, fixed_abs, tag = 'smem constant byte address 0x4 - core index']
  #allocation1 [shape = 'u32[72,128]{1,0:T(1,128)}', space=vmem, size = 0x9000, scoped, tag = 'internal scratch']
  %s0 = inlined_call_operand.hbm [shape: f32[2,8,128], index: 0, kind: input, shape index: {}]
  %s1 = inlined_call_operand.hbm [shape: f32[2,3,8,128], index: 1, kind: output, shape index: {}]
  %s2 = sld [smem:[#allocation0]]
  $region41: #{tpu_custom_call.1} parent=0
    _
  %s4 = ssub.s32 1, %s2
  %s5 = scalar_select 0, %s4, %s2
  $region1: #{tpu_custom_call.1} parent=0
    #allocation2 [shape = 'u8[8192]{0}', space=vmem, size = 0x2000, scoped, tag = 'input window, operand 0']
    #allocation3 [shape = 's32[2]{0}', space=sflag, size = 0x8, scoped, tag = 'scoped memory for tpu_custom_call.1']
    #allocation4 [shape = 's32[2]{0}', space=sflag, size = 0x8, scoped, tag = 'scoped memory for tpu_custom_call.1']
    #allocation5 [shape = 'u8[24576]{0}', space=vmem, size = 0x6000, scoped, tag = 'output window, operand 0']
    %6 = vsyncpa [#allocation3], 0
    %s7 = scalar_lea.sflag [#allocation3], 1
    %8 = vsyncpa %s7, 0
    %9 = vsyncpa [#allocation4], 0
    %s10 = scalar_lea.sflag [#allocation4], 1
    %11 = vsyncpa %s10, 0
    loop: start=0, step=1, limit=4
    $region2: #{tpu_custom_call.1} parent=1 // loop_pre_header
      _
    $region3: #{tpu_custom_call.1} parent=1 // loop_header
      %s13 = sphi 0, %s17
      %p14 = scmp.ge.s32.totalorder %s13, 4
      %s20 = sphi 0, %s32
      %s21 = sphi 0, %s28
      %s22 = sphi 0, %s20
      %s23 = sphi 0, %s21
      %s24 = sphi 0, %s22
      %s25 = sphi 0, %s23
      %s37 = sphi 0, %s39
      %s40 = sphi 0, %s37
      %s41 = sphi 0, %s40
      %s57 = sphi 0, %s41
      %s65 = sphi 0, %s67
      %s68 = sphi 0, %s65
      %s69 = sphi 0, %s68
      %s85 = sphi 0, %s69
    $region4: #{tpu_custom_call.1} parent=1 // loop_header_branch
      %16 = sbr.rel (%p14) target = $region8
    $region5: #{tpu_custom_call.1} parent=1 // loop_body
      %s18 = ssub.s32 %s13, 1
      %s19 = ssub.s32 %s13, 2
      %s26 = sadd.s32 1, %s21
      %p27 = scmp.ge.s32.totalorder %s26, 1
      %s28 = scalar_select %p27, 0, %s26
      %s29 = sadd.s32 1, %s20
      %s30 = scalar_select %p27, %s29, %s20
      %p31 = scmp.ge.s32.totalorder %s30, 2
      %s32 = scalar_select %p31, 0, %s30
      %s33 = ssub.s32 %s20, %s32
      %s34 = ssub.s32 %s21, %s28
      %s35 = sor.u32 %s33, %s34
      %p36 = scmp.eq.s32.totalorder %s35, 0
      %s38 = sadd.s32 %s37, 1
      %s39 = scalar_select %p36, %s37, %s38
      %p42 = pneg %p36
      %p43 = scmp.eq.s32.totalorder %s13, 1
      %p44 = por %p42, %p43
      %p45 = scmp.ne.s32.totalorder %s37, %s40
      %p46 = scmp.eq.s32.totalorder %s13, 0
      %p47 = por %p45, %p46
      %p48 = scmp.ne.s32.totalorder %s37, %s40
      %p49 = scmp.eq.s32.totalorder %s18, 1
      %p50 = por %p48, %p49
      %p51 = scmp.ne.s32.totalorder %s40, %s41
      %p52 = scmp.eq.s32.totalorder %s18, 0
      %p53 = por %p51, %p52
      %p54 = scmp.ne.s32.totalorder %s40, %s41
      %p55 = scmp.eq.s32.totalorder %s19, 1
      %p56 = por %p54, %p55
      %p58 = scmp.ne.s32.totalorder %s41, %s57
      %p59 = scmp.eq.s32.totalorder %s19, 0
      %p60 = por %p58, %p59
      %s61 = ssub.s32 %s20, %s32
      %s62 = ssub.s32 %s21, %s28
      %s63 = sor.u32 %s61, %s62
      %p64 = scmp.eq.s32.totalorder %s63, 0
      %s66 = sadd.s32 %s65, 1
      %s67 = scalar_select %p64, %s65, %s66
      %p70 = pneg %p64
      %p71 = scmp.eq.s32.totalorder %s13, 1
      %p72 = por %p70, %p71
      %p73 = scmp.ne.s32.totalorder %s65, %s68
      %p74 = scmp.eq.s32.totalorder %s13, 0
      %p75 = por %p73, %p74
      %p76 = scmp.ne.s32.totalorder %s65, %s68
      %p77 = scmp.eq.s32.totalorder %s18, 1
      %p78 = por %p76, %p77
      %p79 = scmp.ne.s32.totalorder %s68, %s69
      %p80 = scmp.eq.s32.totalorder %s18, 0
      %p81 = por %p79, %p80
      %p82 = scmp.ne.s32.totalorder %s68, %s69
      %p83 = scmp.eq.s32.totalorder %s19, 1
      %p84 = por %p82, %p83
      %p86 = scmp.ne.s32.totalorder %s69, %s85
      %p87 = scmp.eq.s32.totalorder %s19, 0
      %p88 = por %p86, %p87
      %p89 = scmp.le.s32.totalorder 1, %s13
      %p90 = scmp.lt.s32.totalorder %s13, 3
      %p91 = pnand %p89, %p90
      %p92 = pneg %p91
      // Predicated region
      $region9: #{tpu_custom_call.1} parent=5 // pred_check
        _
      $region10: #{tpu_custom_call.1} parent=5 // pred_check_branch
        %94 = sbr.rel (%p91) target = $region12
      $region11: #{tpu_custom_call.1} parent=5 // pred_region
        %s95 = ssub.s32 %s13, 1
      $region12: #{tpu_custom_call.1} parent=5 // pred_fallthru
        _
      %p96 = scmp.lt.s32.totalorder %s13, 2
      // Predicated region
      $region13: #{tpu_custom_call.1} parent=5 // pred_check
        %p97 = pneg %p96
      $region14: #{tpu_custom_call.1} parent=5 // pred_check_branch
        %99 = sbr.rel (%p97) target = $region16
      $region15: #{tpu_custom_call.1} parent=5 // pred_region
        // Predicated region
        $region17: #{tpu_custom_call.1} parent=15 // pred_check
          %p100 = pneg %p47
        $region18: #{tpu_custom_call.1} parent=15 // pred_check_branch
          %102 = sbr.rel (%p100) target = $region20
        $region19: #{tpu_custom_call.1} parent=15 // pred_region
          %s103 = sand.u32 %s37, 1
          %s104 = scalar_lea.sflag [#allocation3], %s103
          %s105 = sand.u32 %s37, 1
          %s106 = smul.addr %s105, 8
          %s107 = scalar_lea.vmem [#allocation2], %s106
          %109 = vsyncadd %s104, 0
          %s110 = sadd.s32 %s21, %s20
          %s111 = smul.addr %s110, 8
          %s112 = scalar_lea.hbm %s0, %s111
          %s114 = sshll.u32 %s112, 4
          %s115 = int_to_ptr.hbm [resolvable:$true] %s114
          %s116 = sshll.u32 %s107, 4
          %s117 = int_to_ptr.vmem [resolvable:$true] %s116
          %119 = dma.hbm_to_vmem [thread:$0]  %s115, 128, %s117, %s104
        $region20: #{tpu_custom_call.1} parent=15 // pred_fallthru
          _
      $region16: #{tpu_custom_call.1} parent=5 // pred_fallthru
        _
      %p120 = scmp.le.s32.totalorder 1, %s13
      %p121 = scmp.lt.s32.totalorder %s13, 3
      %p122 = pnand %p120, %p121
      %p123 = pneg %p122
      // Predicated region
      $region21: #{tpu_custom_call.1} parent=5 // pred_check
        _
      $region22: #{tpu_custom_call.1} parent=5 // pred_check_branch
        %125 = sbr.rel (%p122) target = $region24
      $region23: #{tpu_custom_call.1} parent=5 // pred_region
        %s126 = ssub.s32 %s13, 1
        %s127 = sand.u32 %s40, 1
        %s128 = scalar_lea.sflag [#allocation3], %s127
        %s129 = sand.u32 %s40, 1
        %s130 = smul.addr %s129, 8
        %s131 = scalar_lea.vmem [#allocation2], %s130
        // Predicated region
        $region25: #{tpu_custom_call.1} parent=23 // pred_check
          %p132 = pneg %p53
        $region26: #{tpu_custom_call.1} parent=23 // pred_check_branch
          %134 = sbr.rel (%p132) target = $region28
        $region27: #{tpu_custom_call.1} parent=23 // pred_region
          %136 = dma.done %s128, 128
        $region28: #{tpu_custom_call.1} parent=23 // pred_fallthru
          _
        %s137 = sand.u32 %s40, 1
        %s138 = scalar_lea.sflag [#allocation3], %s137
        %s139 = sand.u32 %s40, 1
        %s140 = smul.addr %s139, 8
        %s141 = scalar_lea.vmem [#allocation2], %s140
        %p142 = pneg %p53
        %p143 = pneg %p50
        %p144 = pneg %p81
        %p145 = pneg %p78
        %s146 = sand.u32 %s68, 1
        %s147 = scalar_lea.sflag [#allocation4], %s146
        %s148 = sand.u32 %s68, 1
        %s149 = smul.addr %s148, 24
        %s150 = scalar_lea.vmem [#allocation5], %s149
        %v151 = vld [vmem:[%s131] sm:$0xff]
        %152 = vst [vmem:[%s150] sm:$0xff] %v151
        %v153 = vld [vmem:[%s131] sm:$0xff]
        %s154 = scalar_lea.vmem %s150, 8 [#allocation5]
        %155 = vst [vmem:[%s154] sm:$0xff] %v153
        %v156 = vld [vmem:[%s131] sm:$0xff]
        %s157 = scalar_lea.vmem %s150, 16 [#allocation5]
        %158 = vst [vmem:[%s157] sm:$0xff] %v156
        %s159 = sand.u32 %s68, 1
        %s160 = scalar_lea.sflag [#allocation4], %s159
        %s161 = sand.u32 %s68, 1
        %s162 = smul.addr %s161, 24
        %s163 = scalar_lea.vmem [#allocation5], %s162
        // Predicated region
        $region29: #{tpu_custom_call.1} parent=23 // pred_check
          %p164 = pneg %p78
        $region30: #{tpu_custom_call.1} parent=23 // pred_check_branch
          %166 = sbr.rel (%p164) target = $region32
        $region31: #{tpu_custom_call.1} parent=23 // pred_region
          %168 = vsyncadd %s160, 0
          %s169 = smul.addr %s22, 3
          %s170 = sadd.s32 %s23, %s169
          %s171 = smul.addr %s170, 8
          %s172 = scalar_lea.hbm %s1, %s171
          %s173 = sshll.u32 %s163, 4
          %s174 = int_to_ptr.vmem [resolvable:$true] %s173
          %s175 = sshll.u32 %s172, 4
          %s176 = int_to_ptr.hbm [resolvable:$true] %s175
          %181 = dma.vmem_to_hbm [thread:$0]  %s174, 384, %s176, %s160, 128, 128, 8
        $region32: #{tpu_custom_call.1} parent=23 // pred_fallthru
          _
      $region24: #{tpu_custom_call.1} parent=5 // pred_fallthru
        _
      %p182 = scmp.le.s32.totalorder 2, %s13
      // Predicated region
      $region33: #{tpu_custom_call.1} parent=5 // pred_check
        %p183 = pneg %p182
      $region34: #{tpu_custom_call.1} parent=5 // pred_check_branch
        %185 = sbr.rel (%p183) target = $region36
      $region35: #{tpu_custom_call.1} parent=5 // pred_region
        %s186 = ssub.s32 %s13, 2
        // Predicated region
        $region37: #{tpu_custom_call.1} parent=35 // pred_check
          %p187 = pneg %p84
        $region38: #{tpu_custom_call.1} parent=35 // pred_check_branch
          %189 = sbr.rel (%p187) target = $region40
        $region39: #{tpu_custom_call.1} parent=35 // pred_region
          %s190 = sand.u32 %s69, 1
          %s191 = scalar_lea.sflag [#allocation4], %s190
          %s192 = sand.u32 %s69, 1
          %s193 = smul.addr %s192, 24
          %s194 = scalar_lea.vmem [#allocation5], %s193
          %196 = dma.done %s191, 384
        $region40: #{tpu_custom_call.1} parent=35 // pred_fallthru
          _
      $region36: #{tpu_custom_call.1} parent=5 // pred_fallthru
        _
    $region6: #{tpu_custom_call.1} parent=1 // loop_footer
      %s17 = sadd.s32 1, %s13
    $region7: #{tpu_custom_call.1} parent=1 // loop_footer_branch
      %12 = sbr.rel target = $region3
    $region8: #{tpu_custom_call.1} parent=1 // loop_exit
      _
    %197 = vsyncpa [#allocation3], 1
    %s198 = scalar_lea.sflag [#allocation3], 1
    %199 = vsyncpa %s198, 1
    %200 = vsyncpa [#allocation4], 1
    %s201 = scalar_lea.sflag [#allocation4], 1
    %202 = vsyncpa %s201, 1

</llo_original>
